<compile_context>
chip_gen: v5e
topology: v5e:2x2
jax: 0.10.0
libtpu: 0.0.40
codegen_flags: <defaults>
</compile_context>

<pallas_src>
import jax
import jax.numpy as jnp
from jax import lax
from jax.experimental import pallas as pl
from jax.experimental.pallas import tpu as pltpu

BN_EPS = 1e-5
_TARGET_X_BLOCK_BYTES = 3 << 20       # ~3 MiB x blocks (per review: 2-4 MiB sweet spot)
_VMEM_LIMIT = 48 * 1024 * 1024        # under v7x's 64 MiB/TC, generous on v5e/v6e


# ----- Pass 1: avg-pool + (folded) 1x1 conv + ReLU + accumulated BN partial stats -----
def _pool_conv_relu_stats_kernel(x_ref, b_ref, y_ref, stats_ref):
    # x_ref    : VMEM [1, Cin, TH2, 2W]  rows 2h2 / 2h2+1 concatenated on the lane axis
    # b_ref    : VMEM [Cin, W, L]        folded 0.25*pool-pair*conv weights, L = Cout*W2
    # y_ref    : VMEM [1, Cout, TH2, W2] pre-BN activations, NCHW blocks
    # stats_ref: VMEM [1, 2, L]          per-image BN partials (sum / sumsq), accumulated over t
    cin = x_ref.shape[1]
    cout = y_ref.shape[1]
    w = x_ref.shape[3] // 2
    w2 = y_ref.shape[3]
    t = pl.program_id(1)

    # AvgPool2d(2,2): H-pair add on the VPU; W-pair (x0.25) and the 1x1 conv are folded
    # into one MXU matmul per input channel, accumulated in an f32 values tile.
    acc = None
    for ci in range(cin):
        xc = x_ref[0, ci].astype(jnp.float32)                 # [TH2, 2W]
        rowsum = xc[:, :w] + xc[:, w:]                        # [TH2, W]
        part = jnp.dot(rowsum, b_ref[ci],
                       preferred_element_type=jnp.float32)    # [TH2, L]
        acc = part if acc is None else acc + part

    y = jnp.maximum(acc, 0.0)                                 # ReLU (before BN, as in module)

    # Store pre-BN activations directly in NCHW block layout (per-channel lane slices).
    for co in range(cout):
        y_ref[0, co] = y[:, co * w2:(co + 1) * w2].astype(y_ref.dtype)

    # BN partial stats: two packed lane-wide stores, accumulated across the H2-tile
    # grid axis (stats block index_map ignores t, so the block stays VMEM-resident).
    @pl.when(t == 0)
    def _():
        stats_ref[...] = jnp.zeros_like(stats_ref)

    stats_ref[0, 0:1, :] = stats_ref[0, 0:1, :] + jnp.sum(y, axis=0, keepdims=True)
    stats_ref[0, 1:2, :] = stats_ref[0, 1:2, :] + jnp.sum(y * y, axis=0, keepdims=True)


# --------------- Pass 2: lane-dense, in-place folded-BN affine apply -------------------
def _bn_apply_kernel(scale_ref, shift_ref, y_ref, out_ref):
    # scale_ref/shift_ref: VMEM [TR, 1] per-(image,channel)-row affine
    # y_ref/out_ref      : VMEM [TR, TS] flat (n*Cout, H2*W2) blocks, TS multiple of 128
    out_ref[...] = y_ref[...] * scale_ref[...] + shift_ref[...]


# ----------------------------------- tiling helpers ------------------------------------
def _choose_h2_tiling(h2, row_bytes, target_bytes):
    """Pick (th2, padded_h2). th2 is either the full height or a multiple of 8; if H2 has
    no multiple-of-8 divisor within the byte budget, H2 is padded up (zero rows)."""
    max_rows = max(8, target_bytes // max(row_bytes, 1))
    if h2 <= max_rows:
        return h2, h2                                  # single block covers full height
    cap = (max_rows // 8) * 8
    for th2 in range(cap, 0, -8):                      # largest mult-of-8 divisor in budget
        if h2 % th2 == 0:
            return th2, h2
    th2 = cap                                          # no divisor: pad H2 to a multiple
    h2p = ((h2 + th2 - 1) // th2) * th2
    return th2, h2p


def _pick_block_dim(dim, unit, max_elems):
    """Largest block size dividing `dim`, a multiple of `unit`, and <= max_elems;
    falls back to the full extent (always a legal TPU block dim)."""
    if dim % unit == 0:
        cap = min(dim, max(unit, max_elems))
        cap -= cap % unit
        for b in range(cap, 0, -unit):
            if dim % b == 0:
                return b
    return dim


# --------------------------------------- wrapper ---------------------------------------
def down_trans(x, conv_w, gamma, beta):
    """x: [N, Cin, H, W] (NCHW, any float dtype). conv_w: [Cout, Cin]. gamma/beta: [Cout]."""
    N, Cin, H, W = x.shape
    Cout = conv_w.shape[0]
    assert H % 2 == 0 and W % 2 == 0, "AvgPool2d(2,2) path expects even H, W"
    H2, W2 = H // 2, W // 2
    L = Cout * W2

    # FREE row-major reshape: each row of length 2W holds input rows 2h2 and 2h2+1
    # back-to-back on the lane axis. No host-side dtype cast (done in-kernel on the VPU).
    x2 = x.reshape(N, Cin, H2, 2 * W)

    row_bytes = Cin * 2 * W * x.dtype.itemsize
    th2, H2p = _choose_h2_tiling(H2, row_bytes, _TARGET_X_BLOCK_BYTES)
    if H2p != H2:
        # Rare path (H2 not a multiple of 8 and larger than one block): zero-pad rows.
        # Zero rows pool/conv/ReLU to 0 and contribute 0 to the BN sums.
        x2 = jnp.pad(x2, ((0, 0), (0, 0), (0, H2p - H2), (0, 0)))
    T = H2p // th2

    # Fold AvgPool's column-pairing (x0.25) and the 1x1 conv into per-input-channel
    # matmul RHS:  B[ci, w, co*W2 + w2] = 0.25 * conv_w[co, ci] * (w // 2 == w2).
    pool = ((jnp.arange(W)[:, None] // 2) == jnp.arange(W2)[None, :])
    pool = pool.astype(jnp.float32) * 0.25                                   # [W, W2]
    B = jnp.einsum('wv,oc->cwov', pool, conv_w.astype(jnp.float32)).reshape(Cin, W, L)

    cparams1 = pltpu.CompilerParams(
        # t is the stats-accumulation axis -> "arbitrary"; n stays "parallel".
        # TODO(synk): on v7x use pltpu.CORE_PARALLEL on the n axis to engage both
        # TensorCores; kept as plain "parallel" here for portability.
        dimension_semantics=("parallel", "arbitrary"),
        vmem_limit_bytes=_VMEM_LIMIT,
    )

    y_pre, stats = pl.pallas_call(
        _pool_conv_relu_stats_kernel,
        grid=(N, T),
        in_specs=[
            pl.BlockSpec((1, Cin, th2, 2 * W), lambda n, t: (n, 0, t, 0)),   # x block
            pl.BlockSpec((Cin, W, L), lambda n, t: (0, 0, 0)),               # folded weights
        ],
        out_specs=[
            pl.BlockSpec((1, Cout, th2, W2), lambda n, t: (n, 0, t, 0)),     # pre-BN y (NCHW)
            pl.BlockSpec((1, 2, L), lambda n, t: (n, 0, 0)),                 # per-image stats
        ],
        out_shape=[
            jax.ShapeDtypeStruct((N, Cout, H2p, W2), jnp.float32),
            jax.ShapeDtypeStruct((N, 2, L), jnp.float32),
        ],
        compiler_params=cparams1,
    )(x2, B)

    # Tiny reduction folds training-mode BatchNorm (batch mean / biased batch variance)
    # into a per-channel affine: y_norm = y * scale + shift.
    st = stats.sum(axis=0).reshape(2, Cout, W2).sum(axis=2)                  # [2, Cout]
    count = jnp.float32(N * H2 * W2)                 # padded rows contributed exactly 0
    mean = st[0] / count
    # TODO(synk): E[y^2]-mean^2 in f32 can lose precision for very large N*H2*W2; a
    # Chan-style per-image combine would be more robust if that regime matters.
    var = jnp.maximum(st[1] / count - mean * mean, 0.0)
    scale = gamma.astype(jnp.float32) * lax.rsqrt(var + BN_EPS)
    shift = beta.astype(jnp.float32) - mean * scale

    # ---- Pass 2: in-place, lane-dense elementwise BN apply on the flat NCHW view. ----
    R = N * Cout
    M = H2p * W2
    y_flat = y_pre.reshape(R, M)                     # free row-major reshape of NCHW
    scale_rows = jnp.tile(scale, N)[:, None]         # row r = n*Cout + co  ->  scale[co]
    shift_rows = jnp.tile(shift, N)[:, None]

    ts = _pick_block_dim(M, 128, 64 * 1024)          # lane-dense last dim (mult of 128)
    tr = _pick_block_dim(R, 8, max(8, (2 << 20) // (4 * ts)))
    grid2 = (R // tr, M // ts)

    out_flat = pl.pallas_call(
        _bn_apply_kernel,
        grid=grid2,
        in_specs=[
            pl.BlockSpec((tr, 1), lambda r, s: (r, 0)),                      # scale rows
            pl.BlockSpec((tr, 1), lambda r, s: (r, 0)),                      # shift rows
            pl.BlockSpec((tr, ts), lambda r, s: (r, s)),                     # pre-BN y
        ],
        out_specs=pl.BlockSpec((tr, ts), lambda r, s: (r, s)),
        out_shape=jax.ShapeDtypeStruct((R, M), jnp.float32),
        input_output_aliases={2: 0},                 # write BN result in place over y_pre
        compiler_params=pltpu.CompilerParams(
            dimension_semantics=("parallel", "parallel"),
            vmem_limit_bytes=_VMEM_LIMIT,
        ),
    )(scale_rows, shift_rows, y_flat)

    out = out_flat.reshape(N, Cout, H2p, W2)
    if H2p != H2:
        out = out[:, :, :H2, :]
    return out


def down_trans_reference(x, conv_w, gamma, beta):
    """Pure-JAX reference with identical semantics (for verification)."""
    N, Cin, H, W = x.shape
    Cout = conv_w.shape[0]
    H2, W2 = H // 2, W // 2
    xf = x.astype(jnp.float32)
    pooled = xf.reshape(N, Cin, H2, 2, W2, 2).mean(axis=(3, 5))              # AvgPool2d(2,2)
    y = jnp.einsum('nchw,oc->nohw', pooled, conv_w.astype(jnp.float32))      # 1x1 conv
    y = jnp.maximum(y, 0.0)                                                  # ReLU
    mean = y.mean(axis=(0, 2, 3), keepdims=True)
    var = ((y - mean) ** 2).mean(axis=(0, 2, 3), keepdims=True)              # biased var
    y = gamma.reshape(1, Cout, 1, 1) * (y - mean) * lax.rsqrt(var + BN_EPS) \
        + beta.reshape(1, Cout, 1, 1)
    return y


if __name__ == "__main__":
    # Module config: dwon_trans(name, compress_factor=1, in_channel=4)
    N, Cin, H, W = 2, 4, 16, 16
    compress_factor = 1
    Cout = int(Cin * compress_factor)

    key = jax.random.PRNGKey(0)
    kx, kw, kg, kb = jax.random.split(key, 4)

    x = jax.random.normal(kx, (N, Cin, H, W), dtype=jnp.float32)
    # Conv2d weight [Cout, Cin, 1, 1] -> squeezed to [Cout, Cin]; deterministic init.
    conv_w = 0.1 * jax.random.normal(kw, (Cout, Cin), dtype=jnp.float32)
    gamma = 1.0 + 0.1 * jax.random.normal(kg, (Cout,), dtype=jnp.float32)
    beta = 0.1 * jax.random.normal(kb, (Cout,), dtype=jnp.float32)

    down_trans_fn = jax.jit(down_trans)      # jit so the in-place alias in pass 2 is free
    out = down_trans_fn(x, conv_w, gamma, beta)
    out = jax.block_until_ready(out)

    ref = down_trans_reference(x, conv_w, gamma, beta)
    assert out.shape == (N, Cout, H // 2, W // 2), out.shape
    assert jnp.allclose(out, ref, atol=1e-4, rtol=1e-4), float(jnp.max(jnp.abs(out - ref)))

    print("KERNEL_OK")
</pallas_src>

<mosaic_0001>
module attributes {stable_mosaic.version = 11 : i64} {
  func.func @_pool_conv_relu_stats_kernel(%arg0: i32, %arg1: i32, %arg2: memref<1x4x8x32xf32, #tpu.memory_space<vmem>>, %arg3: memref<4x16x32xf32, #tpu.memory_space<vmem>>, %arg4: memref<1x4x8x8xf32, #tpu.memory_space<vmem>>, %arg5: memref<1x2x32xf32, #tpu.memory_space<vmem>>) attributes {dimension_semantics = [#tpu.dimension_semantics<parallel>, #tpu.dimension_semantics<arbitrary>], iteration_bounds = array<i64: 2, 1>, scalar_prefetch = 0 : i64, scratch_operands = 0 : i64, tpu.core_type = #tpu.core_type<tc>, window_params = [{transform_indices = @transform_0, window_bounds = array<i64: 1, 4, 8, 32>}, {pipeline_mode = #tpu.pipeline_mode<synchronous>, transform_indices = @transform_1, window_bounds = array<i64: 4, 16, 32>}, {transform_indices = @transform_2, window_bounds = array<i64: 1, 4, 8, 8>}, {transform_indices = @transform_3, window_bounds = array<i64: 1, 2, 32>}]} {
    %c0 = arith.constant 0 : index
    %c0_0 = arith.constant 0 : index
    %c0_1 = arith.constant 0 : index
    %c0_2 = arith.constant 0 : index
    %0 = vector.load %arg2[%c0, %c0_0, %c0_1, %c0_2] : memref<1x4x8x32xf32, #tpu.memory_space<vmem>>, vector<1x1x8x32xf32>
    %1 = vector.shape_cast %0 : vector<1x1x8x32xf32> to vector<8x32xf32>
    %2 = vector.extract_strided_slice %1 {offsets = [0, 0], sizes = [8, 16], strides = [1, 1]} : vector<8x32xf32> to vector<8x16xf32>
    %3 = vector.extract_strided_slice %1 {offsets = [0, 16], sizes = [8, 16], strides = [1, 1]} : vector<8x32xf32> to vector<8x16xf32>
    %4 = arith.addf %2, %3 : vector<8x16xf32>
    %c0_3 = arith.constant 0 : index
    %c0_4 = arith.constant 0 : index
    %c0_5 = arith.constant 0 : index
    %5 = vector.load %arg3[%c0_3, %c0_4, %c0_5] : memref<4x16x32xf32, #tpu.memory_space<vmem>>, vector<1x16x32xf32>
    %6 = vector.shape_cast %5 : vector<1x16x32xf32> to vector<16x32xf32>
    %cst = arith.constant dense<0.000000e+00> : vector<8x32xf32>
    %7 = tpu.matmul %4, %6, %cst {dimension_numbers = #tpu.dot_dimension_numbers<[1], [0], [0], [1], [0, 0, 1, 1], [], []>} : vector<8x16xf32>, vector<16x32xf32>, vector<8x32xf32> -> vector<8x32xf32>
    %c0_6 = arith.constant 0 : index
    %c1 = arith.constant 1 : index
    %c0_7 = arith.constant 0 : index
    %c0_8 = arith.constant 0 : index
    %8 = vector.load %arg2[%c0_6, %c1, %c0_7, %c0_8] : memref<1x4x8x32xf32, #tpu.memory_space<vmem>>, vector<1x1x8x32xf32>
    %9 = vector.shape_cast %8 : vector<1x1x8x32xf32> to vector<8x32xf32>
    %10 = vector.extract_strided_slice %9 {offsets = [0, 0], sizes = [8, 16], strides = [1, 1]} : vector<8x32xf32> to vector<8x16xf32>
    %11 = vector.extract_strided_slice %9 {offsets = [0, 16], sizes = [8, 16], strides = [1, 1]} : vector<8x32xf32> to vector<8x16xf32>
    %12 = arith.addf %10, %11 : vector<8x16xf32>
    %c1_9 = arith.constant 1 : index
    %c0_10 = arith.constant 0 : index
    %c0_11 = arith.constant 0 : index
    %13 = vector.load %arg3[%c1_9, %c0_10, %c0_11] : memref<4x16x32xf32, #tpu.memory_space<vmem>>, vector<1x16x32xf32>
    %14 = vector.shape_cast %13 : vector<1x16x32xf32> to vector<16x32xf32>
    %cst_12 = arith.constant dense<0.000000e+00> : vector<8x32xf32>
    %15 = tpu.matmul %12, %14, %cst_12 {dimension_numbers = #tpu.dot_dimension_numbers<[1], [0], [0], [1], [0, 0, 1, 1], [], []>} : vector<8x16xf32>, vector<16x32xf32>, vector<8x32xf32> -> vector<8x32xf32>
    %16 = arith.addf %7, %15 : vector<8x32xf32>
    %c0_13 = arith.constant 0 : index
    %c2 = arith.constant 2 : index
    %c0_14 = arith.constant 0 : index
    %c0_15 = arith.constant 0 : index
    %17 = vector.load %arg2[%c0_13, %c2, %c0_14, %c0_15] : memref<1x4x8x32xf32, #tpu.memory_space<vmem>>, vector<1x1x8x32xf32>
    %18 = vector.shape_cast %17 : vector<1x1x8x32xf32> to vector<8x32xf32>
    %19 = vector.extract_strided_slice %18 {offsets = [0, 0], sizes = [8, 16], strides = [1, 1]} : vector<8x32xf32> to vector<8x16xf32>
    %20 = vector.extract_strided_slice %18 {offsets = [0, 16], sizes = [8, 16], strides = [1, 1]} : vector<8x32xf32> to vector<8x16xf32>
    %21 = arith.addf %19, %20 : vector<8x16xf32>
    %c2_16 = arith.constant 2 : index
    %c0_17 = arith.constant 0 : index
    %c0_18 = arith.constant 0 : index
    %22 = vector.load %arg3[%c2_16, %c0_17, %c0_18] : memref<4x16x32xf32, #tpu.memory_space<vmem>>, vector<1x16x32xf32>
    %23 = vector.shape_cast %22 : vector<1x16x32xf32> to vector<16x32xf32>
    %cst_19 = arith.constant dense<0.000000e+00> : vector<8x32xf32>
    %24 = tpu.matmul %21, %23, %cst_19 {dimension_numbers = #tpu.dot_dimension_numbers<[1], [0], [0], [1], [0, 0, 1, 1], [], []>} : vector<8x16xf32>, vector<16x32xf32>, vector<8x32xf32> -> vector<8x32xf32>
    %25 = arith.addf %16, %24 : vector<8x32xf32>
    %c0_20 = arith.constant 0 : index
    %c3 = arith.constant 3 : index
    %c0_21 = arith.constant 0 : index
    %c0_22 = arith.constant 0 : index
    %26 = vector.load %arg2[%c0_20, %c3, %c0_21, %c0_22] : memref<1x4x8x32xf32, #tpu.memory_space<vmem>>, vector<1x1x8x32xf32>
    %27 = vector.shape_cast %26 : vector<1x1x8x32xf32> to vector<8x32xf32>
    %28 = vector.extract_strided_slice %27 {offsets = [0, 0], sizes = [8, 16], strides = [1, 1]} : vector<8x32xf32> to vector<8x16xf32>
    %29 = vector.extract_strided_slice %27 {offsets = [0, 16], sizes = [8, 16], strides = [1, 1]} : vector<8x32xf32> to vector<8x16xf32>
    %30 = arith.addf %28, %29 : vector<8x16xf32>
    %c3_23 = arith.constant 3 : index
    %c0_24 = arith.constant 0 : index
    %c0_25 = arith.constant 0 : index
    %31 = vector.load %arg3[%c3_23, %c0_24, %c0_25] : memref<4x16x32xf32, #tpu.memory_space<vmem>>, vector<1x16x32xf32>
    %32 = vector.shape_cast %31 : vector<1x16x32xf32> to vector<16x32xf32>
    %cst_26 = arith.constant dense<0.000000e+00> : vector<8x32xf32>
    %33 = tpu.matmul %30, %32, %cst_26 {dimension_numbers = #tpu.dot_dimension_numbers<[1], [0], [0], [1], [0, 0, 1, 1], [], []>} : vector<8x16xf32>, vector<16x32xf32>, vector<8x32xf32> -> vector<8x32xf32>
    %34 = arith.addf %25, %33 : vector<8x32xf32>
    %cst_27 = arith.constant 0.000000e+00 : f32
    %35 = vector.broadcast %cst_27 : f32 to vector<8x32xf32>
    %36 = arith.maximumf %34, %35 : vector<8x32xf32>
    %37 = vector.extract_strided_slice %36 {offsets = [0, 0], sizes = [8, 8], strides = [1, 1]} : vector<8x32xf32> to vector<8x8xf32>
    %c0_28 = arith.constant 0 : index
    %c0_29 = arith.constant 0 : index
    %c0_30 = arith.constant 0 : index
    %c0_31 = arith.constant 0 : index
    %38 = vector.load %arg4[%c0_28, %c0_29, %c0_30, %c0_31] : memref<1x4x8x8xf32, #tpu.memory_space<vmem>>, vector<1x1x8x8xf32>
    %39 = vector.shape_cast %38 : vector<1x1x8x8xf32> to vector<8x8xf32>
    %40 = vector.shape_cast %37 : vector<8x8xf32> to vector<1x1x8x8xf32>
    tpu.vector_store %arg4[%c0_28, %c0_29, %c0_30, %c0_31], %40 {strides = array<i32>} : memref<1x4x8x8xf32, #tpu.memory_space<vmem>>, vector<1x1x8x8xf32>,
    %41 = vector.extract_strided_slice %36 {offsets = [0, 8], sizes = [8, 8], strides = [1, 1]} : vector<8x32xf32> to vector<8x8xf32>
    %c0_32 = arith.constant 0 : index
    %c1_33 = arith.constant 1 : index
    %c0_34 = arith.constant 0 : index
    %c0_35 = arith.constant 0 : index
    %42 = vector.load %arg4[%c0_32, %c1_33, %c0_34, %c0_35] : memref<1x4x8x8xf32, #tpu.memory_space<vmem>>, vector<1x1x8x8xf32>
    %43 = vector.shape_cast %42 : vector<1x1x8x8xf32> to vector<8x8xf32>
    %44 = vector.shape_cast %41 : vector<8x8xf32> to vector<1x1x8x8xf32>
    tpu.vector_store %arg4[%c0_32, %c1_33, %c0_34, %c0_35], %44 {strides = array<i32>} : memref<1x4x8x8xf32, #tpu.memory_space<vmem>>, vector<1x1x8x8xf32>,
    %45 = vector.extract_strided_slice %36 {offsets = [0, 16], sizes = [8, 8], strides = [1, 1]} : vector<8x32xf32> to vector<8x8xf32>
    %c0_36 = arith.constant 0 : index
    %c2_37 = arith.constant 2 : index
    %c0_38 = arith.constant 0 : index
    %c0_39 = arith.constant 0 : index
    %46 = vector.load %arg4[%c0_36, %c2_37, %c0_38, %c0_39] : memref<1x4x8x8xf32, #tpu.memory_space<vmem>>, vector<1x1x8x8xf32>
    %47 = vector.shape_cast %46 : vector<1x1x8x8xf32> to vector<8x8xf32>
    %48 = vector.shape_cast %45 : vector<8x8xf32> to vector<1x1x8x8xf32>
    tpu.vector_store %arg4[%c0_36, %c2_37, %c0_38, %c0_39], %48 {strides = array<i32>} : memref<1x4x8x8xf32, #tpu.memory_space<vmem>>, vector<1x1x8x8xf32>,
    %49 = vector.extract_strided_slice %36 {offsets = [0, 24], sizes = [8, 8], strides = [1, 1]} : vector<8x32xf32> to vector<8x8xf32>
    %c0_40 = arith.constant 0 : index
    %c3_41 = arith.constant 3 : index
    %c0_42 = arith.constant 0 : index
    %c0_43 = arith.constant 0 : index
    %50 = vector.load %arg4[%c0_40, %c3_41, %c0_42, %c0_43] : memref<1x4x8x8xf32, #tpu.memory_space<vmem>>, vector<1x1x8x8xf32>
    %51 = vector.shape_cast %50 : vector<1x1x8x8xf32> to vector<8x8xf32>
    %52 = vector.shape_cast %49 : vector<8x8xf32> to vector<1x1x8x8xf32>
    tpu.vector_store %arg4[%c0_40, %c3_41, %c0_42, %c0_43], %52 {strides = array<i32>} : memref<1x4x8x8xf32, #tpu.memory_space<vmem>>, vector<1x1x8x8xf32>,
    %c0_i32 = arith.constant 0 : i32
    %53 = arith.cmpi eq, %arg1, %c0_i32 : i32
    %54 = arith.extui %53 : i1 to i32
    %c0_i32_44 = arith.constant 0 : i32
    %55 = arith.cmpi ne, %54, %c0_i32_44 : i32
    scf.if %55 {
      %cst_59 = arith.constant 0.000000e+00 : f32
      %73 = vector.broadcast %cst_59 : f32 to vector<1x2x32xf32>
      %c0_60 = arith.constant 0 : index
      %c0_61 = arith.constant 0 : index
      %c0_62 = arith.constant 0 : index
      %74 = vector.load %arg5[%c0_60, %c0_61, %c0_62] : memref<1x2x32xf32, #tpu.memory_space<vmem>>, vector<1x2x32xf32>
      tpu.vector_store %arg5[%c0_60, %c0_61, %c0_62], %73 {strides = array<i32>} : memref<1x2x32xf32, #tpu.memory_space<vmem>>, vector<1x2x32xf32>,
    } else {
    }
    %c0_45 = arith.constant 0 : index
    %c0_46 = arith.constant 0 : index
    %c0_47 = arith.constant 0 : index
    %56 = vector.load %arg5[%c0_45, %c0_46, %c0_47] : memref<1x2x32xf32, #tpu.memory_space<vmem>>, vector<1x1x32xf32>
    %57 = vector.shape_cast %56 : vector<1x1x32xf32> to vector<1x32xf32>
    %cst_48 = arith.constant dense<0.000000e+00> : vector<32xf32>
    %58 = vector.multi_reduction <add>, %36, %cst_48 [0] : vector<8x32xf32> to vector<32xf32>
    %59 = vector.shape_cast %58 : vector<32xf32> to vector<1x32xf32>
    %60 = arith.addf %57, %59 : vector<1x32xf32>
    %c0_49 = arith.constant 0 : index
    %c0_50 = arith.constant 0 : index
    %c0_51 = arith.constant 0 : index
    %61 = vector.load %arg5[%c0_49, %c0_50, %c0_51] : memref<1x2x32xf32, #tpu.memory_space<vmem>>, vector<1x1x32xf32>
    %62 = vector.shape_cast %61 : vector<1x1x32xf32> to vector<1x32xf32>
    %63 = vector.shape_cast %60 : vector<1x32xf32> to vector<1x1x32xf32>
    tpu.vector_store %arg5[%c0_49, %c0_50, %c0_51], %63 {strides = array<i32>} : memref<1x2x32xf32, #tpu.memory_space<vmem>>, vector<1x1x32xf32>,
    %c0_52 = arith.constant 0 : index
    %c1_53 = arith.constant 1 : index
    %c0_54 = arith.constant 0 : index
    %64 = vector.load %arg5[%c0_52, %c1_53, %c0_54] : memref<1x2x32xf32, #tpu.memory_space<vmem>>, vector<1x1x32xf32>
    %65 = vector.shape_cast %64 : vector<1x1x32xf32> to vector<1x32xf32>
    %66 = arith.mulf %36, %36 : vector<8x32xf32>
    %cst_55 = arith.constant dense<0.000000e+00> : vector<32xf32>
    %67 = vector.multi_reduction <add>, %66, %cst_55 [0] : vector<8x32xf32> to vector<32xf32>
    %68 = vector.shape_cast %67 : vector<32xf32> to vector<1x32xf32>
    %69 = arith.addf %65, %68 : vector<1x32xf32>
    %c0_56 = arith.constant 0 : index
    %c1_57 = arith.constant 1 : index
    %c0_58 = arith.constant 0 : index
    %70 = vector.load %arg5[%c0_56, %c1_57, %c0_58] : memref<1x2x32xf32, #tpu.memory_space<vmem>>, vector<1x1x32xf32>
    %71 = vector.shape_cast %70 : vector<1x1x32xf32> to vector<1x32xf32>
    %72 = vector.shape_cast %69 : vector<1x32xf32> to vector<1x1x32xf32>
    tpu.vector_store %arg5[%c0_56, %c1_57, %c0_58], %72 {strides = array<i32>} : memref<1x2x32xf32, #tpu.memory_space<vmem>>, vector<1x1x32xf32>,
    return
  }
  func.func @transform_0(%arg0: i32, %arg1: i32) -> (i32, i32, i32, i32) {
    %c0_i32 = arith.constant 0 : i32
    %c0_i32_0 = arith.constant 0 : i32
    %c0_i32_1 = arith.constant 0 : i32
    return %arg0, %c0_i32, %arg1, %c0_i32_0 : i32, i32, i32, i32
  }
  func.func @transform_1(%arg0: i32, %arg1: i32) -> (i32, i32, i32) {
    %c0_i32 = arith.constant 0 : i32
    %c0_i32_0 = arith.constant 0 : i32
    %c0_i32_1 = arith.constant 0 : i32
    %c0_i32_2 = arith.constant 0 : i32
    return %c0_i32, %c0_i32_0, %c0_i32_1 : i32, i32, i32
  }
  func.func @transform_2(%arg0: i32, %arg1: i32) -> (i32, i32, i32, i32) {
    %c0_i32 = arith.constant 0 : i32
    %c0_i32_0 = arith.constant 0 : i32
    %c0_i32_1 = arith.constant 0 : i32
    return %arg0, %c0_i32, %arg1, %c0_i32_0 : i32, i32, i32, i32
  }
  func.func @transform_3(%arg0: i32, %arg1: i32) -> (i32, i32, i32) {
    %c0_i32 = arith.constant 0 : i32
    %c0_i32_0 = arith.constant 0 : i32
    %c0_i32_1 = arith.constant 0 : i32
    return %arg0, %c0_i32, %c0_i32_0 : i32, i32, i32
  }
}

module attributes {stable_mosaic.version = 11 : i64} {
  func.func @_bn_apply_kernel(%arg0: i32, %arg1: i32, %arg2: memref<8x1xf32, #tpu.memory_space<vmem>>, %arg3: memref<8x1xf32, #tpu.memory_space<vmem>>, %arg4: memref<8x64xf32, #tpu.memory_space<vmem>>, %arg5: memref<8x64xf32, #tpu.memory_space<vmem>>) attributes {dimension_semantics = [#tpu.dimension_semantics<parallel>, #tpu.dimension_semantics<parallel>], iteration_bounds = array<i64: 1, 1>, scalar_prefetch = 0 : i64, scratch_operands = 0 : i64, tpu.core_type = #tpu.core_type<tc>, window_params = [{transform_indices = @transform_0, window_bounds = array<i64: 8, 1>}, {transform_indices = @transform_1, window_bounds = array<i64: 8, 1>}, {transform_indices = @transform_2, window_bounds = array<i64: 8, 64>}, {transform_indices = @transform_3, window_bounds = array<i64: 8, 64>}]} {
    %c0 = arith.constant 0 : index
    %c0_0 = arith.constant 0 : index
    %0 = vector.load %arg4[%c0, %c0_0] : memref<8x64xf32, #tpu.memory_space<vmem>>, vector<8x64xf32>
    %c0_1 = arith.constant 0 : index
    %c0_2 = arith.constant 0 : index
    %1 = vector.load %arg2[%c0_1, %c0_2] : memref<8x1xf32, #tpu.memory_space<vmem>>, vector<8x1xf32>
    %2 = vector.broadcast %1 : vector<8x1xf32> to vector<8x64xf32>
    %3 = arith.mulf %0, %2 : vector<8x64xf32>
    %c0_3 = arith.constant 0 : index
    %c0_4 = arith.constant 0 : index
    %4 = vector.load %arg3[%c0_3, %c0_4] : memref<8x1xf32, #tpu.memory_space<vmem>>, vector<8x1xf32>
    %5 = vector.broadcast %4 : vector<8x1xf32> to vector<8x64xf32>
    %6 = arith.addf %3, %5 : vector<8x64xf32>
    %c0_5 = arith.constant 0 : index
    %c0_6 = arith.constant 0 : index
    %7 = vector.load %arg5[%c0_5, %c0_6] : memref<8x64xf32, #tpu.memory_space<vmem>>, vector<8x64xf32>
    tpu.vector_store %arg5[%c0_5, %c0_6], %6 {strides = array<i32>} : memref<8x64xf32, #tpu.memory_space<vmem>>, vector<8x64xf32>,
    return
  }
  func.func @transform_0(%arg0: i32, %arg1: i32) -> (i32, i32) {
    %c0_i32 = arith.constant 0 : i32
    %c0_i32_0 = arith.constant 0 : i32
    return %arg0, %c0_i32 : i32, i32
  }
  func.func @transform_1(%arg0: i32, %arg1: i32) -> (i32, i32) {
    %c0_i32 = arith.constant 0 : i32
    %c0_i32_0 = arith.constant 0 : i32
    return %arg0, %c0_i32 : i32, i32
  }
  func.func @transform_2(%arg0: i32, %arg1: i32) -> (i32, i32) {
    %c0_i32 = arith.constant 0 : i32
    return %arg0, %arg1 : i32, i32
  }
  func.func @transform_3(%arg0: i32, %arg1: i32) -> (i32, i32) {
    %c0_i32 = arith.constant 0 : i32
    return %arg0, %arg1 : i32, i32
  }
}

</mosaic_0001>

<llo_original>
// kernel: tile.13
$region0: #{tile.13}
  #allocation0 [shape = 's32[1]{0}', space=sflag, size = 0x4, scoped, tag = 'scoped memory for tile.13']
  %s0 = inlined_call_operand.vmem [shape: f32[4], index: 0, kind: input, shape index: {}]
  %s1 = inlined_call_operand.vmem [shape: f32[2,4], index: 1, kind: output, shape index: {}]
  // Predicated region
  $region2: #{tile.13} parent=0 // pred_check
    _
  $region3: #{tile.13} parent=0 // pred_check_branch
    %3 = sbr.rel (0) target = $region5
  $region4: #{tile.13} parent=0 // pred_region
    _
  $region5: #{tile.13} parent=0 // pred_fallthru
    _
  %v4 = vld [vmem:[%s0] ss:$0 sm:$0xff]
  %5 = vst [vmem:[%s1] sm:$0x3] %v4

// kernel: tile.0
$region0: #{tile.0}
  %s0 = inlined_call_operand.vmem [shape: f32[2,4], index: 0, kind: input, shape index: {}]
  %s1 = inlined_call_operand.vmem [shape: f32[8,1], index: 1, kind: output, shape index: {}]
  $region1: #{tile.0} parent=0
    #allocation0 [shape = 'u8[4096]{0}', space=vmem, size = 0x1000, scoped, tag = 'scoped mem for input reshape']
    %s3 = ssub.s32 4, 1
    %v4 = vld [vmem:[%s0] sm:%s3]
    %5 = vst [vmem:[#allocation0] sm:%s3] %v4
    %v6 = vld [vmem:[#allocation0] sm:$0x3]
    %vm7 = vcmask 7168
    %8 = vst.msk [vmem:[%s1] ss:$4 sm:$0x3] %vm7, %v6
    %v9 = vld [vmem:[#allocation0] sm:$0x3]
    %10 = vrot.lane.b32.xlu0 %v9, 127
    %v11 = vpop.permute.xlu0 %10
    %vm12 = vcmask 7168
    %s13 = scalar_lea.vmem %s1, 1
    %14 = vst.msk [vmem:[%s13] ss:$4 sm:$0x3] %vm12, %v11
    %v15 = vld [vmem:[#allocation0] sm:$0x3]
    %16 = vrot.lane.b32.xlu0 %v15, 126
    %v17 = vpop.permute.xlu0 %16
    %vm18 = vcmask 7168
    %s19 = scalar_lea.vmem %s1, 2
    %20 = vst.msk [vmem:[%s19] ss:$4 sm:$0x3] %vm18, %v17
    %v21 = vld [vmem:[#allocation0] sm:$0x3]
    %22 = vrot.lane.b32.xlu0 %v21, 125
    %v23 = vpop.permute.xlu0 %22
    %vm24 = vcmask 7168
    %s25 = scalar_lea.vmem %s1, 3
    %26 = vst.msk [vmem:[%s25] ss:$4 sm:$0x3] %vm24, %v23

// kernel: down_trans.3
$region0: #{down_trans.3}
  #allocation0 [shape = 'u32[]', space=smem, size = 0x4, offset = 0x4, fixed_abs, tag = 'smem constant byte address 0x4 - core index']
  #allocation1 [shape = 'u32[72,128]{1,0:T(1,128)}', space=vmem, size = 0x9000, scoped, tag = 'internal scratch']
  %s0 = inlined_call_operand.vmem [shape: f32[8,1], index: 0, kind: input, shape index: {}]
  %s1 = inlined_call_operand.vmem [shape: f32[8,1], index: 1, kind: input, shape index: {}]
  %s2 = inlined_call_operand.vmem [shape: f32[8,64], index: 2, kind: input, shape index: {}, may-alias: {2,3}]
  %s3 = inlined_call_operand.vmem [shape: f32[8,64], index: 3, kind: output, shape index: {}, may-alias: {2,3}]
  %s4 = sld [smem:[#allocation0]]
  $region22: #{down_trans.3} parent=0
    _
  %s6 = ssub.s32 1, %s4
  %s7 = scalar_select 0, %s6, %s4
  // Predicated region
  $region2: #{down_trans.3} parent=0 // pred_check
    _
  $region3: #{down_trans.3} parent=0 // pred_check_branch
    %9 = sbr.rel (0) target = $region5
  $region4: #{down_trans.3} parent=0 // pred_region
    _
  $region5: #{down_trans.3} parent=0 // pred_fallthru
    _
  // Predicated region
  $region6: #{down_trans.3} parent=0 // pred_check
    _
  $region7: #{down_trans.3} parent=0 // pred_check_branch
    %11 = sbr.rel (0) target = $region9
  $region8: #{down_trans.3} parent=0 // pred_region
    _
  $region9: #{down_trans.3} parent=0 // pred_fallthru
    _
  // Predicated region
  $region10: #{down_trans.3} parent=0 // pred_check
    _
  $region11: #{down_trans.3} parent=0 // pred_check_branch
    %13 = sbr.rel (0) target = $region13
  $region12: #{down_trans.3} parent=0 // pred_region
    _
  $region13: #{down_trans.3} parent=0 // pred_fallthru
    _
  %v14 = vld [vmem:[%s2] sm:$0xff]
  %v15 = vld [vmem:[%s0] sm:$0xff]
  %17 = vset.pattern.permute.xlu0 0
  %18 = vperm.xlu0 %17, %v15
  %v19 = vpop.permute.xlu0 %18
  %v21 = vmul.f32 %v14, %v19
  %v22 = vld [vmem:[%s1] sm:$0xff]
  %24 = vset.pattern.permute.xlu0 0
  %25 = vperm.xlu0 %24, %v22
  %v26 = vpop.permute.xlu0 %25
  %v28 = vadd.f32 %v21, %v26
  %vm29 = vcmask 523264
  %30 = vst.msk [vmem:[%s3] sm:$0xff] %vm29, %v28
  // Predicated region
  $region14: #{down_trans.3} parent=0 // pred_check
    _
  $region15: #{down_trans.3} parent=0 // pred_check_branch
    %32 = sbr.rel (0) target = $region17
  $region16: #{down_trans.3} parent=0 // pred_region
    _
  $region17: #{down_trans.3} parent=0 // pred_fallthru
    _
  // Predicated region
  $region18: #{down_trans.3} parent=0 // pred_check
    _
  $region19: #{down_trans.3} parent=0 // pred_check_branch
    %34 = sbr.rel (0) target = $region21
  $region20: #{down_trans.3} parent=0 // pred_region
    _
  $region21: #{down_trans.3} parent=0 // pred_fallthru
    _

// kernel: down_trans.2
$region0: #{down_trans.2}
  #allocation0 [shape = 'u32[]', space=smem, size = 0x4, offset = 0x4, fixed_abs, tag = 'smem constant byte address 0x4 - core index']
  #allocation1 [shape = 'u32[72,128]{1,0:T(1,128)}', space=vmem, size = 0x9000, scoped, tag = 'internal scratch']
  %s0 = inlined_call_operand.vmem [shape: f32[2,4,8,32], index: 0, kind: input, shape index: {}]
  %s1 = inlined_call_operand.vmem [shape: f32[4,16,32], index: 1, kind: input, shape index: {}]
  %s2 = inlined_call_operand.vmem [shape: f32[2,4,8,8], index: 2, kind: output, shape index: {0}]
  %s3 = inlined_call_operand.vmem [shape: f32[2,2,32], index: 3, kind: output, shape index: {1}]
  %4 = xla_tuple %s2, %s3
  %s5 = sld [smem:[#allocation0]]
  $region53: #{down_trans.2} parent=0
    _
  %s7 = ssub.s32 1, %s5
  %s8 = scalar_select 0, %s7, %s5
  loop: start=0, step=1, limit=4
  $region2: #{down_trans.2} parent=0 // loop_pre_header
    _
  $region3: #{down_trans.2} parent=0 // loop_header
    %s10 = sphi 0, %s14
    %p11 = scmp.ge.s32.totalorder %s10, 4
    %s17 = sphi 0, %s29
    %s18 = sphi 0, %s25
    %s19 = sphi 0, %s17
    %s20 = sphi 0, %s18
    %s21 = sphi 0, %s19
    %s22 = sphi 0, %s20
    %s34 = sphi 0, %s36
    %s37 = sphi 0, %s34
    %s38 = sphi 0, %s37
    %s54 = sphi 0, %s38
    %s58 = sphi 0, %s58
    %s60 = sphi 0, %s58
    %s61 = sphi 0, %s60
    %s75 = sphi 0, %s61
    %s83 = sphi 0, %s85
    %s86 = sphi 0, %s83
    %s87 = sphi 0, %s86
    %s103 = sphi 0, %s87
    %s109 = sphi 0, %s111
    %s112 = sphi 0, %s109
    %s113 = sphi 0, %s112
    %s129 = sphi 0, %s113
  $region4: #{down_trans.2} parent=0 // loop_header_branch
    %13 = sbr.rel (%p11) target = $region8
  $region5: #{down_trans.2} parent=0 // loop_body
    %s15 = ssub.s32 %s10, 1
    %s16 = ssub.s32 %s10, 2
    %s23 = sadd.s32 1, %s18
    %p24 = scmp.ge.s32.totalorder %s23, 1
    %s25 = scalar_select %p24, 0, %s23
    %s26 = sadd.s32 1, %s17
    %s27 = scalar_select %p24, %s26, %s17
    %p28 = scmp.ge.s32.totalorder %s27, 2
    %s29 = scalar_select %p28, 0, %s27
    %s30 = ssub.s32 %s17, %s29
    %s31 = ssub.s32 %s18, %s25
    %s32 = sor.u32 %s30, %s31
    %p33 = scmp.eq.s32.totalorder %s32, 0
    %s35 = sadd.s32 %s34, 1
    %s36 = scalar_select %p33, %s34, %s35
    %p39 = pneg %p33
    %p40 = scmp.eq.s32.totalorder %s10, 1
    %p41 = por %p39, %p40
    %p42 = scmp.ne.s32.totalorder %s34, %s37
    %p43 = scmp.eq.s32.totalorder %s10, 0
    %p44 = por %p42, %p43
    %p45 = scmp.ne.s32.totalorder %s34, %s37
    %p46 = scmp.eq.s32.totalorder %s15, 1
    %p47 = por %p45, %p46
    %p48 = scmp.ne.s32.totalorder %s37, %s38
    %p49 = scmp.eq.s32.totalorder %s15, 0
    %p50 = por %p48, %p49
    %p51 = scmp.ne.s32.totalorder %s37, %s38
    %p52 = scmp.eq.s32.totalorder %s16, 1
    %p53 = por %p51, %p52
    %p55 = scmp.ne.s32.totalorder %s38, %s54
    %p56 = scmp.eq.s32.totalorder %s16, 0
    %p57 = por %p55, %p56
    %s59 = sadd.s32 %s58, 1
    %p62 = scmp.eq.s32.totalorder %s10, 1
    %p63 = scmp.ne.s32.totalorder %s58, %s60
    %p64 = scmp.eq.s32.totalorder %s10, 0
    %p65 = por %p63, %p64
    %p66 = scmp.ne.s32.totalorder %s58, %s60
    %p67 = scmp.eq.s32.totalorder %s15, 1
    %p68 = por %p66, %p67
    %p69 = scmp.ne.s32.totalorder %s60, %s61
    %p70 = scmp.eq.s32.totalorder %s15, 0
    %p71 = por %p69, %p70
    %p72 = scmp.ne.s32.totalorder %s60, %s61
    %p73 = scmp.eq.s32.totalorder %s16, 1
    %p74 = por %p72, %p73
    %p76 = scmp.ne.s32.totalorder %s61, %s75
    %p77 = scmp.eq.s32.totalorder %s16, 0
    %p78 = por %p76, %p77
    %s79 = ssub.s32 %s17, %s29
    %s80 = ssub.s32 %s18, %s25
    %s81 = sor.u32 %s79, %s80
    %p82 = scmp.eq.s32.totalorder %s81, 0
    %s84 = sadd.s32 %s83, 1
    %s85 = scalar_select %p82, %s83, %s84
    %p88 = pneg %p82
    %p89 = scmp.eq.s32.totalorder %s10, 1
    %p90 = por %p88, %p89
    %p91 = scmp.ne.s32.totalorder %s83, %s86
    %p92 = scmp.eq.s32.totalorder %s10, 0
    %p93 = por %p91, %p92
    %p94 = scmp.ne.s32.totalorder %s83, %s86
    %p95 = scmp.eq.s32.totalorder %s15, 1
    %p96 = por %p94, %p95
    %p97 = scmp.ne.s32.totalorder %s86, %s87
    %p98 = scmp.eq.s32.totalorder %s15, 0
    %p99 = por %p97, %p98
    %p100 = scmp.ne.s32.totalorder %s86, %s87
    %p101 = scmp.eq.s32.totalorder %s16, 1
    %p102 = por %p100, %p101
    %p104 = scmp.ne.s32.totalorder %s87, %s103
    %p105 = scmp.eq.s32.totalorder %s16, 0
    %p106 = por %p104, %p105
    %s107 = ssub.s32 %s17, %s29
    %p108 = scmp.eq.s32.totalorder %s107, 0
    %s110 = sadd.s32 %s109, 1
    %s111 = scalar_select %p108, %s109, %s110
    %p114 = pneg %p108
    %p115 = scmp.eq.s32.totalorder %s10, 1
    %p116 = por %p114, %p115
    %p117 = scmp.ne.s32.totalorder %s109, %s112
    %p118 = scmp.eq.s32.totalorder %s10, 0
    %p119 = por %p117, %p118
    %p120 = scmp.ne.s32.totalorder %s109, %s112
    %p121 = scmp.eq.s32.totalorder %s15, 1
    %p122 = por %p120, %p121
    %p123 = scmp.ne.s32.totalorder %s112, %s113
    %p124 = scmp.eq.s32.totalorder %s15, 0
    %p125 = por %p123, %p124
    %p126 = scmp.ne.s32.totalorder %s112, %s113
    %p127 = scmp.eq.s32.totalorder %s16, 1
    %p128 = por %p126, %p127
    %p130 = scmp.ne.s32.totalorder %s113, %s129
    %p131 = scmp.eq.s32.totalorder %s16, 0
    %p132 = por %p130, %p131
    %p133 = scmp.le.s32.totalorder 1, %s10
    %p134 = scmp.lt.s32.totalorder %s10, 3
    %p135 = pnand %p133, %p134
    %p136 = pneg %p135
    // Predicated region
    $region9: #{down_trans.2} parent=5 // pred_check
      _
    $region10: #{down_trans.2} parent=5 // pred_check_branch
      %138 = sbr.rel (%p135) target = $region12
    $region11: #{down_trans.2} parent=5 // pred_region
      %s139 = ssub.s32 %s10, 1
      // Predicated region
      $region13: #{down_trans.2} parent=11 // pred_check
        %p140 = pneg %p71
      $region14: #{down_trans.2} parent=11 // pred_check_branch
        %142 = sbr.rel (%p140) target = $region16
      $region15: #{down_trans.2} parent=11 // pred_region
        _
      $region16: #{down_trans.2} parent=11 // pred_fallthru
        _
    $region12: #{down_trans.2} parent=5 // pred_fallthru
      _
    %p143 = scmp.lt.s32.totalorder %s10, 2
    // Predicated region
    $region17: #{down_trans.2} parent=5 // pred_check
      %p144 = pneg %p143
    $region18: #{down_trans.2} parent=5 // pred_check_branch
      %146 = sbr.rel (%p144) target = $region20
    $region19: #{down_trans.2} parent=5 // pred_region
      // Predicated region
      $region21: #{down_trans.2} parent=19 // pred_check
        %p147 = pneg %p44
      $region22: #{down_trans.2} parent=19 // pred_check_branch
        %149 = sbr.rel (%p147) target = $region24
      $region23: #{down_trans.2} parent=19 // pred_region
        %p150 = scmp.lt.s32.totalorder %s17, 1
        %s151 = scalar_select %p150, %s17, 1
        %p152 = scmp.lt.s32.totalorder %s18, 0
        %s153 = scalar_select %p152, %s18, 0
        %s154 = smul.addr %s151, 4
        %s155 = sadd.s32 %s153, %s154
        %s156 = smul.addr %s155, 8
        %s157 = scalar_lea.vmem %s0, %s156
      $region24: #{down_trans.2} parent=19 // pred_fallthru
        _
    $region20: #{down_trans.2} parent=5 // pred_fallthru
      _
    %p158 = scmp.le.s32.totalorder 1, %s10
    %p159 = scmp.lt.s32.totalorder %s10, 3
    %p160 = pnand %p158, %p159
    %p161 = pneg %p160
    // Predicated region
    $region25: #{down_trans.2} parent=5 // pred_check
      _
    $region26: #{down_trans.2} parent=5 // pred_check_branch
      %163 = sbr.rel (%p160) target = $region28
    $region27: #{down_trans.2} parent=5 // pred_region
      %s164 = ssub.s32 %s10, 1
      %p165 = scmp.lt.s32.totalorder %s19, 1
      %s166 = scalar_select %p165, %s19, 1
      %p167 = scmp.lt.s32.totalorder %s20, 0
      %s168 = scalar_select %p167, %s20, 0
      %s169 = smul.addr %s166, 4
      %s170 = sadd.s32 %s168, %s169
      %s171 = smul.addr %s170, 8
      %s172 = scalar_lea.vmem %s0, %s171
      %p173 = pneg %p50
      %p174 = pneg %p47
      %p175 = pneg %p71
      %p176 = pneg %p68
      %p177 = pneg %p99
      %p178 = pneg %p96
      %p179 = scmp.lt.s32.totalorder %s19, 1
      %s180 = scalar_select %p179, %s19, 1
      %p181 = scmp.lt.s32.totalorder %s20, 0
      %s182 = scalar_select %p181, %s20, 0
      %s183 = smul.addr %s180, 4
      %s184 = sadd.s32 %s182, %s183
      %s185 = smul.addr %s184, 8
      %s186 = scalar_lea.vmem %s2, %s185
      %p187 = pneg %p125
      %p188 = pneg %p122
      %p189 = scmp.lt.s32.totalorder %s19, 1
      %s190 = scalar_select %p189, %s19, 1
      %s191 = smul.addr %s190, 2
      %s192 = scalar_lea.vmem %s3, %s191
      %p193 = scmp.lt.s32.totalorder %s19, 1
      %s194 = scalar_select %p193, %s19, 1
      %p195 = scmp.lt.s32.totalorder %s20, 0
      %s196 = scalar_select %p195, %s20, 0
      %s197 = smul.addr %s194, 4
      %s198 = sadd.s32 %s196, %s197
      %s199 = smul.addr %s198, 8
      %s200 = scalar_lea.vmem %s0, %s199
      %p201 = scmp.lt.s32.totalorder %s19, 1
      %s202 = scalar_select %p201, %s19, 1
      %p203 = scmp.lt.s32.totalorder %s20, 0
      %s204 = scalar_select %p203, %s20, 0
      %s205 = smul.addr %s202, 4
      %s206 = sadd.s32 %s204, %s205
      %s207 = smul.addr %s206, 8
      %s208 = scalar_lea.vmem %s2, %s207
      %p209 = scmp.lt.s32.totalorder %s19, 1
      %s210 = scalar_select %p209, %s19, 1
      %s211 = smul.addr %s210, 2
      %s212 = scalar_lea.vmem %s3, %s211
      %v213 = vld [vmem:[%s200] sm:$0xff]
      %215 = vrot.lane.b32.xlu0 %v213, 112
      %v216 = vpop.permute.xlu0 %215
      %v218 = vadd.f32 %v213, %v216
      %v219 = vld [vmem:[%s1] sm:$0xff]
      %v220 = vld [vmem:[%s1 + $0x8] sm:$0xff]
      %s221 = scalar_lea.vmem %s200, 8
      %v222 = vld [vmem:[%s221] sm:$0xff]
      %224 = vrot.lane.b32.xlu0 %v222, 112
      %v225 = vpop.permute.xlu0 %224
      %v227 = vadd.f32 %v222, %v225
      %s228 = scalar_lea.vmem %s1, 16
      %v229 = vld [vmem:[%s228] sm:$0xff]
      %v230 = vld [vmem:[%s228 + $0x8] sm:$0xff]
      %vm231 = vcmask 130048
      %v233 = vsel %vm231, %v227, 0
      %235 = vmatpush.msra.mxu0 0.0
      %236 = vmatpush.msra.mxu0 0.0
      %237 = vmatpush.msra.mxu0 0.0
      %238 = vmatpush.msra.mxu0 0.0
      %239 = vmatpush.msra.mxu0 0.0
      %240 = vmatpush.msra.mxu0 0.0
      %241 = vmatpush.msra.mxu0 0.0
      %242 = vmatpush.msra.mxu0 0.0
      %243 = vmatpush.msra.mxu0 0.0
      %244 = vmatpush.msra.mxu0 0.0
      %245 = vmatpush.msra.mxu0 0.0
      %246 = vmatpush.msra.mxu0 0.0
      %247 = vmatpush.msra.mxu0 0.0
      %248 = vmatpush.msra.mxu0 0.0
      %249 = vmatpush.msra.mxu0 %v230
      %250 = vmatpush.msra.mxu0 %v229
      %251 = vmatmul.f32.gmra.mxu0 %v233
      %v252 = vpop.f32.mrf.mxu0
      %v253 = vadd.f32 0.0, %v252
      %254 = vdwg.mxu0
      %v256 = vsel %vm231, %v218, 0
      %258 = vmatpush.msra.mxu0 0.0
      %259 = vmatpush.msra.mxu0 0.0
      %260 = vmatpush.msra.mxu0 0.0
      %261 = vmatpush.msra.mxu0 0.0
      %262 = vmatpush.msra.mxu0 0.0
      %263 = vmatpush.msra.mxu0 0.0
      %264 = vmatpush.msra.mxu0 0.0
      %265 = vmatpush.msra.mxu0 0.0
      %266 = vmatpush.msra.mxu0 0.0
      %267 = vmatpush.msra.mxu0 0.0
      %268 = vmatpush.msra.mxu0 0.0
      %269 = vmatpush.msra.mxu0 0.0
      %270 = vmatpush.msra.mxu0 0.0
      %271 = vmatpush.msra.mxu0 0.0
      %272 = vmatpush.msra.mxu0 %v220
      %273 = vmatpush.msra.mxu0 %v219
      %274 = vmatmul.f32.gmra.mxu0 %v256
      %v275 = vpop.f32.mrf.mxu0
      %v276 = vadd.f32 %v253, %v275
      %277 = vdwg.mxu0
      %s278 = scalar_lea.vmem %s200, 16
      %v279 = vld [vmem:[%s278] sm:$0xff]
      %281 = vrot.lane.b32.xlu0 %v279, 112
      %v282 = vpop.permute.xlu0 %281
      %v284 = vadd.f32 %v279, %v282
      %s285 = scalar_lea.vmem %s1, 32
      %v286 = vld [vmem:[%s285] sm:$0xff]
      %v287 = vld [vmem:[%s285 + $0x8] sm:$0xff]
      %v289 = vsel %vm231, %v284, 0
      %291 = vmatpush.msra.mxu0 0.0
      %292 = vmatpush.msra.mxu0 0.0
      %293 = vmatpush.msra.mxu0 0.0
      %294 = vmatpush.msra.mxu0 0.0
      %295 = vmatpush.msra.mxu0 0.0
      %296 = vmatpush.msra.mxu0 0.0
      %297 = vmatpush.msra.mxu0 0.0
      %298 = vmatpush.msra.mxu0 0.0
      %299 = vmatpush.msra.mxu0 0.0
      %300 = vmatpush.msra.mxu0 0.0
      %301 = vmatpush.msra.mxu0 0.0
      %302 = vmatpush.msra.mxu0 0.0
      %303 = vmatpush.msra.mxu0 0.0
      %304 = vmatpush.msra.mxu0 0.0
      %305 = vmatpush.msra.mxu0 %v287
      %306 = vmatpush.msra.mxu0 %v286
      %307 = vmatmul.f32.gmra.mxu0 %v289
      %v308 = vpop.f32.mrf.mxu0
      %v309 = vadd.f32 0.0, %v308
      %310 = vdwg.mxu0
      %v311 = vadd.f32 %v276, %v309
      %s312 = scalar_lea.vmem %s200, 24
      %v313 = vld [vmem:[%s312] sm:$0xff]
      %315 = vrot.lane.b32.xlu0 %v313, 112
      %v316 = vpop.permute.xlu0 %315
      %v318 = vadd.f32 %v313, %v316
      %s319 = scalar_lea.vmem %s1, 48
      %v320 = vld [vmem:[%s319] sm:$0xff]
      %v321 = vld [vmem:[%s319 + $0x8] sm:$0xff]
      %v323 = vsel %vm231, %v318, 0
      %325 = vmatpush.msra.mxu0 0.0
      %326 = vmatpush.msra.mxu0 0.0
      %327 = vmatpush.msra.mxu0 0.0
      %328 = vmatpush.msra.mxu0 0.0
      %329 = vmatpush.msra.mxu0 0.0
      %330 = vmatpush.msra.mxu0 0.0
      %331 = vmatpush.msra.mxu0 0.0
      %332 = vmatpush.msra.mxu0 0.0
      %333 = vmatpush.msra.mxu0 0.0
      %334 = vmatpush.msra.mxu0 0.0
      %335 = vmatpush.msra.mxu0 0.0
      %336 = vmatpush.msra.mxu0 0.0
      %337 = vmatpush.msra.mxu0 0.0
      %338 = vmatpush.msra.mxu0 0.0
      %339 = vmatpush.msra.mxu0 %v321
      %340 = vmatpush.msra.mxu0 %v320
      %341 = vmatmul.f32.gmra.mxu0 %v323
      %v342 = vpop.f32.mrf.mxu0
      %v343 = vadd.f32 0.0, %v342
      %344 = vdwg.mxu0
      %v345 = vadd.f32 %v311, %v343
      %v346 = vmax.f32 %v345, 0.0
      %vm347 = vcmask 64512
      %348 = vst.msk [vmem:[%s208] sm:$0xff] %vm347, %v346
      %350 = vrot.lane.b32.xlu0 %v346, 120
      %v351 = vpop.permute.xlu0 %350
      %s353 = scalar_lea.vmem %s208, 8
      %354 = vst.msk [vmem:[%s353] sm:$0xff] %vm347, %v351
      %355 = vrot.lane.b32.xlu0 %v346, 112
      %v356 = vpop.permute.xlu0 %355
      %s358 = scalar_lea.vmem %s208, 16
      %359 = vst.msk [vmem:[%s358] sm:$0xff] %vm347, %v356
      %360 = vrot.lane.b32.xlu0 %v346, 104
      %v361 = vpop.permute.xlu0 %360
      %s363 = scalar_lea.vmem %s208, 24
      %364 = vst.msk [vmem:[%s363] sm:$0xff] %vm347, %v361
      %p365 = scmp.eq.s32.totalorder %s20, 0
      // Predicated region
      $region29: #{down_trans.2} parent=27 // pred_check
        %p366 = pneg %p365
      $region30: #{down_trans.2} parent=27 // pred_check_branch
        %368 = sbr.rel (%p366) target = $region32
      $region31: #{down_trans.2} parent=27 // pred_region
        %vm369 = vcmask 254976
        %370 = vst.msk [vmem:[%s212] sm:$0x3] %vm369, 0.0
      $region32: #{down_trans.2} parent=27 // pred_fallthru
        _
      %v371 = vld [vmem:[%s212] sm:$0x1]
      %vm372 = vcmask 261120
      %v373 = vsel %vm372, %v346, 0.0
      %v374 = vrot.slane %v373, 4
      %v375 = vadd.f32 %v373, %v374
      %v376 = vrot.slane %v375, 2
      %v377 = vadd.f32 %v375, %v376
      %v378 = vrot.slane %v377, 1
      %v379 = vadd.f32 %v377, %v378
      %v380 = vadd.f32 %v371, %v379
      %vm381 = vcmask 253952
      %382 = vst.msk [vmem:[%s212] sm:$0x1] %vm381, %v380
      %v383 = vld [vmem:[%s212 + $0x1] sm:$0x1]
      %v384 = vmul.f32 %v346, %v346
      %v385 = vsel %vm372, %v384, 0.0
      %v386 = vrot.slane %v385, 4
      %v387 = vadd.f32 %v385, %v386
      %v388 = vrot.slane %v387, 2
      %v389 = vadd.f32 %v387, %v388
      %v390 = vrot.slane %v389, 1
      %v391 = vadd.f32 %v389, %v390
      %v392 = vadd.f32 %v383, %v391
      %393 = vst.msk [vmem:[%s212 + $0x1] sm:$0x1] %vm381, %v392
      %p394 = scmp.lt.s32.totalorder %s19, 1
      %s395 = scalar_select %p394, %s19, 1
      %p396 = scmp.lt.s32.totalorder %s20, 0
      %s397 = scalar_select %p396, %s20, 0
      %s398 = smul.addr %s395, 4
      %s399 = sadd.s32 %s397, %s398
      %s400 = smul.addr %s399, 8
      %s401 = scalar_lea.vmem %s2, %s400
      %p402 = scmp.lt.s32.totalorder %s19, 1
      %s403 = scalar_select %p402, %s19, 1
      %s404 = smul.addr %s403, 2
      %s405 = scalar_lea.vmem %s3, %s404
      // Predicated region
      $region33: #{down_trans.2} parent=27 // pred_check
        %p406 = pneg %p96
      $region34: #{down_trans.2} parent=27 // pred_check_branch
        %408 = sbr.rel (%p406) target = $region36
      $region35: #{down_trans.2} parent=27 // pred_region
        _
      $region36: #{down_trans.2} parent=27 // pred_fallthru
        _
      // Predicated region
      $region37: #{down_trans.2} parent=27 // pred_check
        %p409 = pneg %p122
      $region38: #{down_trans.2} parent=27 // pred_check_branch
        %411 = sbr.rel (%p409) target = $region40
      $region39: #{down_trans.2} parent=27 // pred_region
        _
      $region40: #{down_trans.2} parent=27 // pred_fallthru
        _
    $region28: #{down_trans.2} parent=5 // pred_fallthru
      _
    %p412 = scmp.le.s32.totalorder 2, %s10
    // Predicated region
    $region41: #{down_trans.2} parent=5 // pred_check
      %p413 = pneg %p412
    $region42: #{down_trans.2} parent=5 // pred_check_branch
      %415 = sbr.rel (%p413) target = $region44
    $region43: #{down_trans.2} parent=5 // pred_region
      %s416 = ssub.s32 %s10, 2
      // Predicated region
      $region45: #{down_trans.2} parent=43 // pred_check
        %p417 = pneg %p102
      $region46: #{down_trans.2} parent=43 // pred_check_branch
        %419 = sbr.rel (%p417) target = $region48
      $region47: #{down_trans.2} parent=43 // pred_region
        %p420 = scmp.lt.s32.totalorder %s21, 1
        %s421 = scalar_select %p420, %s21, 1
        %p422 = scmp.lt.s32.totalorder %s22, 0
        %s423 = scalar_select %p422, %s22, 0
        %s424 = smul.addr %s421, 4
        %s425 = sadd.s32 %s423, %s424
        %s426 = smul.addr %s425, 8
        %s427 = scalar_lea.vmem %s2, %s426
      $region48: #{down_trans.2} parent=43 // pred_fallthru
        _
      // Predicated region
      $region49: #{down_trans.2} parent=43 // pred_check
        %p428 = pneg %p128
      $region50: #{down_trans.2} parent=43 // pred_check_branch
        %430 = sbr.rel (%p428) target = $region52
      $region51: #{down_trans.2} parent=43 // pred_region
        %p431 = scmp.lt.s32.totalorder %s21, 1
        %s432 = scalar_select %p431, %s21, 1
        %s433 = smul.addr %s432, 2
        %s434 = scalar_lea.vmem %s3, %s433
      $region52: #{down_trans.2} parent=43 // pred_fallthru
        _
    $region44: #{down_trans.2} parent=5 // pred_fallthru
      _
  $region6: #{down_trans.2} parent=0 // loop_footer
    %s14 = sadd.s32 1, %s10
  $region7: #{down_trans.2} parent=0 // loop_footer_branch
    %9 = sbr.rel target = $region3
  $region8: #{down_trans.2} parent=0 // loop_exit
    _

</llo_original>
